<compile_context>
chip_gen: v7x
topology: tpu7x:2x2x1
jax: 0.10.0
libtpu: 0.0.40
codegen_flags: <defaults>
</compile_context>

<pallas_src>
import functools

import jax
import jax.numpy as jnp
from jax.experimental import pallas as pl
from jax.experimental.pallas import tpu as pltpu


# ----------------------------------------------------------------------------
# Kernel 1: fused conv3x3 + ReLU + global-average-pool + FC embedding
#   grid = (B,), one padded image per grid step (double-buffered by Pallas,
#   sharded across TensorCores on v7x via dimension_semantics=("parallel",)).
# ----------------------------------------------------------------------------
def _backbone_kernel(xp_ref, cw_ref, cb_ref, fw_ref, fb_ref, o_ref, *, H, W):
    xp = xp_ref[...]                                   # (H+2, W+2, Cin) bf16
    # Build the 3x3/stride-1/pad-1 patch block in VMEM (im2col never hits HBM).
    cols = [xp[dh:dh + H, dw:dw + W, :] for dh in range(3) for dw in range(3)]
    patches = jnp.concatenate(cols, axis=-1)           # (H, W, 9*Cin) bf16
    patches = patches.reshape(H * W, patches.shape[-1])  # leading-dim collapse only

    # conv-as-matmul on the MXU: bf16 x bf16 -> f32 accumulate
    acc = jnp.dot(patches, cw_ref[...], preferred_element_type=jnp.float32)
    acc = jnp.maximum(acc + cb_ref[...], 0.0)          # bias + ReLU, f32 (HW, Cout)

    # global average pool over the spatial axis (stays in VMEM)
    pooled = jnp.mean(acc, axis=0, keepdims=True)      # (1, Cout) f32

    # FC embedding head
    emb = jnp.dot(pooled, fw_ref[...], preferred_element_type=jnp.float32)
    emb = emb + fb_ref[...]                            # (1, E) f32
    o_ref[...] = emb.astype(o_ref.dtype)


def backbone_fused(xp, conv_w, conv_b, fc_w, fc_b, *, H, W):
    """xp: (B, H+2, W+2, Cin) bf16 -> embedding (B, E) f32."""
    B, Hp, Wp, Cin = xp.shape
    Cout = conv_w.shape[-1]
    E = fc_w.shape[-1]

    cb2 = conv_b.reshape(1, Cout).astype(jnp.float32)
    fb2 = fc_b.reshape(1, E).astype(jnp.float32)

    kern = functools.partial(_backbone_kernel, H=H, W=W)
    flops = int(B * (2 * H * W * 9 * Cin * Cout + 3 * H * W * Cout + 2 * Cout * E))
    bytes_acc = int(xp.size * 2 + conv_w.size * 2
                    + (cb2.size + fc_w.size + fb2.size + B * E) * 4)

    out = pl.pallas_call(
        kern,
        out_shape=jax.ShapeDtypeStruct((B, 1, E), jnp.float32),
        grid=(B,),
        in_specs=[
            # leading batch dim squeezed out of the kernel view
            pl.BlockSpec((None, Hp, Wp, Cin), lambda b: (b, 0, 0, 0)),
            pl.BlockSpec((9 * Cin, Cout), lambda b: (0, 0)),
            pl.BlockSpec((1, Cout), lambda b: (0, 0)),
            pl.BlockSpec((Cout, E), lambda b: (0, 0)),
            pl.BlockSpec((1, E), lambda b: (0, 0)),
        ],
        out_specs=pl.BlockSpec((None, 1, E), lambda b: (b, 0, 0)),
        compiler_params=pltpu.CompilerParams(
            dimension_semantics=("parallel",),
            vmem_limit_bytes=32 * 1024 * 1024,
        ),
        cost_estimate=pl.CostEstimate(
            flops=flops, transcendentals=0, bytes_accessed=bytes_acc),
    )(xp, conv_w.astype(jnp.bfloat16), cb2,
      fc_w.astype(jnp.float32), fb2)
    return out.reshape(B, E)


# ----------------------------------------------------------------------------
# Kernel 2: fused classifier matmul + softmax cross-entropy
#   label is scalar-prefetched into SMEM; one-hot built in-kernel via iota.
# ----------------------------------------------------------------------------
def _head_loss_kernel(label_ref, emb_ref, w_ref, b_ref, o_ref, *, nbatch):
    logits = jnp.dot(emb_ref[...], w_ref[...],
                     preferred_element_type=jnp.float32) + b_ref[...]   # (B, N)
    m = jnp.max(logits, axis=-1, keepdims=True)
    lse = m + jnp.log(jnp.sum(jnp.exp(logits - m), axis=-1, keepdims=True))

    ids = jax.lax.broadcasted_iota(jnp.int32, logits.shape, 1)          # (B, N)
    rows = [(ids[b:b + 1, :] == label_ref[b]).astype(jnp.float32)
            for b in range(nbatch)]
    onehot = rows[0] if nbatch == 1 else jnp.concatenate(rows, axis=0)  # (B, N)

    tgt = jnp.sum(logits * onehot, axis=-1, keepdims=True)
    loss = jnp.mean(lse - tgt)
    o_ref[...] = jnp.full(o_ref.shape, loss, dtype=o_ref.dtype)


def classifier_loss(emb, cls_w, cls_b, label):
    """Mean softmax cross-entropy of (emb @ cls_w + cls_b) vs label -> scalar."""
    B, E = emb.shape
    N = cls_w.shape[-1]
    cb2 = cls_b.reshape(1, N).astype(jnp.float32)
    kern = functools.partial(_head_loss_kernel, nbatch=B)

    out = pl.pallas_call(
        kern,
        out_shape=jax.ShapeDtypeStruct((1, 1), jnp.float32),
        grid_spec=pltpu.PrefetchScalarGridSpec(
            num_scalar_prefetch=1,                      # label -> SMEM
            grid=(1,),
            in_specs=[
                pl.BlockSpec((B, E), lambda i, lbl: (0, 0)),
                pl.BlockSpec((E, N), lambda i, lbl: (0, 0)),
                pl.BlockSpec((1, N), lambda i, lbl: (0, 0)),
            ],
            out_specs=pl.BlockSpec((1, 1), lambda i, lbl: (0, 0)),
        ),
        compiler_params=pltpu.CompilerParams(
            dimension_semantics=("arbitrary",),
            vmem_limit_bytes=32 * 1024 * 1024,
        ),
        cost_estimate=pl.CostEstimate(
            flops=int(2 * B * E * N + 6 * B * N),
            transcendentals=int(B * N + B),
            bytes_accessed=int((B * E + E * N + N + 1) * 4 + B * 4)),
    )(label.astype(jnp.int32), emb.astype(jnp.float32),
      cls_w.astype(jnp.float32), cb2)
    return out[0, 0]


# ----------------------------------------------------------------------------
# Glue: parameter init + AudioNet.forward wrapper
# ----------------------------------------------------------------------------
def init_params(key, cin=4, cout=16, emb=32, ncls=8):
    k1, k2, k3, _ = jax.random.split(key, 4)
    conv_w = jax.random.normal(k1, (3, 3, cin, cout), jnp.float32) * (1.0 / (3 * 3 * cin) ** 0.5)
    fc_w = jax.random.normal(k2, (cout, emb), jnp.float32) * (1.0 / cout ** 0.5)
    cls_w = jax.random.normal(k3, (emb, ncls), jnp.float32) * (1.0 / emb ** 0.5)
    return {
        "conv_w": conv_w.reshape(9 * cin, cout),   # row order (dh, dw, c) matches in-kernel patches
        "conv_b": jnp.zeros((cout,), jnp.float32),
        "fc_w": fc_w,
        "fc_b": jnp.zeros((emb,), jnp.float32),
        "cls_w": cls_w,
        "cls_b": jnp.zeros((ncls,), jnp.float32),
    }


def audionet_forward(params, data, label=None):
    """Mirror of AudioNet.forward(data, label)."""
    # data: (B, C, H, W)  (PyTorch NCHW)  ->  NHWC, pad once, cast bf16 for the MXU.
    x = jnp.transpose(data, (0, 2, 3, 1))
    B, H, W, _ = x.shape
    xp = jnp.pad(x, ((0, 0), (1, 1), (1, 1), (0, 0))).astype(jnp.bfloat16)

    # __S__ : fused conv3x3+ReLU -> GAP -> FC embedding (one gridded kernel)
    output = backbone_fused(xp, params["conv_w"], params["conv_b"],
                            params["fc_w"], params["fc_b"], H=H, W=W)   # (B, emb)

    if label is None:
        return output

    # __L__ : fused classifier + softmax cross-entropy (label via SMEM prefetch)
    return classifier_loss(output, params["cls_w"], params["cls_b"], label)


# TODO(synk): the real __S__/__L__ are resolved via importlib at runtime with
# optional IMAGENET1K_V1 weights; a fixed synthetic backbone + CE loss is used here.

if __name__ == "__main__":
    key = jax.random.PRNGKey(0)
    kp, kd, kl = jax.random.split(key, 3)

    params = init_params(kp, cin=4, cout=16, emb=32, ncls=8)
    data = jax.random.normal(kd, (2, 4, 16, 16), jnp.float32)   # (B, C, H, W)
    label = jax.random.randint(kl, (2,), 0, 8)

    # label == None path: returns the embedding
    emb = audionet_forward(params, data)
    emb = jax.block_until_ready(emb)
    assert emb.shape == (2, 32)

    # label path: returns the scalar loss
    loss = audionet_forward(params, data, label)
    loss = jax.block_until_ready(loss)
    assert loss.shape == ()

    print("KERNEL_OK")
</pallas_src>

<mosaic_0001>
module attributes {stable_mosaic.version = 11 : i64} {
  func.func @_backbone_kernel(%arg0: i32, %arg1: memref<1x18x18x4xbf16, #tpu.memory_space<vmem>>, %arg2: memref<36x16xbf16, #tpu.memory_space<vmem>>, %arg3: memref<1x16xf32, #tpu.memory_space<vmem>>, %arg4: memref<16x32xf32, #tpu.memory_space<vmem>>, %arg5: memref<1x32xf32, #tpu.memory_space<vmem>>, %arg6: memref<1x1x32xf32, #tpu.memory_space<vmem>>) attributes {dimension_semantics = [#tpu.dimension_semantics<parallel>], iteration_bounds = array<i64: 2>, scalar_prefetch = 0 : i64, scratch_operands = 0 : i64, tpu.core_type = #tpu.core_type<tc>, window_params = [{transform_indices = @transform_0, window_bounds = array<i64: 1, 18, 18, 4>}, {pipeline_mode = #tpu.pipeline_mode<synchronous>, transform_indices = @transform_1, window_bounds = array<i64: 36, 16>}, {pipeline_mode = #tpu.pipeline_mode<synchronous>, transform_indices = @transform_2, window_bounds = array<i64: 1, 16>}, {pipeline_mode = #tpu.pipeline_mode<synchronous>, transform_indices = @transform_3, window_bounds = array<i64: 16, 32>}, {pipeline_mode = #tpu.pipeline_mode<synchronous>, transform_indices = @transform_4, window_bounds = array<i64: 1, 32>}, {transform_indices = @transform_5, window_bounds = array<i64: 1, 1, 32>}]} {
    %c0 = arith.constant 0 : index
    %c0_0 = arith.constant 0 : index
    %c0_1 = arith.constant 0 : index
    %c0_2 = arith.constant 0 : index
    %0 = vector.load %arg1[%c0, %c0_0, %c0_1, %c0_2] : memref<1x18x18x4xbf16, #tpu.memory_space<vmem>>, vector<1x18x18x4xbf16>
    %1 = vector.shape_cast %0 : vector<1x18x18x4xbf16> to vector<18x18x4xbf16>
    %2 = vector.extract_strided_slice %1 {offsets = [0, 0, 0], sizes = [16, 16, 4], strides = [1, 1, 1]} : vector<18x18x4xbf16> to vector<16x16x4xbf16>
    %3 = vector.extract_strided_slice %1 {offsets = [0, 1, 0], sizes = [16, 16, 4], strides = [1, 1, 1]} : vector<18x18x4xbf16> to vector<16x16x4xbf16>
    %4 = vector.extract_strided_slice %1 {offsets = [0, 2, 0], sizes = [16, 16, 4], strides = [1, 1, 1]} : vector<18x18x4xbf16> to vector<16x16x4xbf16>
    %5 = vector.extract_strided_slice %1 {offsets = [1, 0, 0], sizes = [16, 16, 4], strides = [1, 1, 1]} : vector<18x18x4xbf16> to vector<16x16x4xbf16>
    %6 = vector.extract_strided_slice %1 {offsets = [1, 1, 0], sizes = [16, 16, 4], strides = [1, 1, 1]} : vector<18x18x4xbf16> to vector<16x16x4xbf16>
    %7 = vector.extract_strided_slice %1 {offsets = [1, 2, 0], sizes = [16, 16, 4], strides = [1, 1, 1]} : vector<18x18x4xbf16> to vector<16x16x4xbf16>
    %8 = vector.extract_strided_slice %1 {offsets = [2, 0, 0], sizes = [16, 16, 4], strides = [1, 1, 1]} : vector<18x18x4xbf16> to vector<16x16x4xbf16>
    %9 = vector.extract_strided_slice %1 {offsets = [2, 1, 0], sizes = [16, 16, 4], strides = [1, 1, 1]} : vector<18x18x4xbf16> to vector<16x16x4xbf16>
    %10 = vector.extract_strided_slice %1 {offsets = [2, 2, 0], sizes = [16, 16, 4], strides = [1, 1, 1]} : vector<18x18x4xbf16> to vector<16x16x4xbf16>
    %11 = tpu.concatenate %2, %3, %4, %5, %6, %7, %8, %9, %10 in 2 : vector<16x16x4xbf16>, vector<16x16x4xbf16>, vector<16x16x4xbf16>, vector<16x16x4xbf16>, vector<16x16x4xbf16>, vector<16x16x4xbf16>, vector<16x16x4xbf16>, vector<16x16x4xbf16>, vector<16x16x4xbf16> -> vector<16x16x36xbf16>
    %12 = vector.shape_cast %11 : vector<16x16x36xbf16> to vector<256x36xbf16>
    %c0_3 = arith.constant 0 : index
    %c0_4 = arith.constant 0 : index
    %13 = vector.load %arg2[%c0_3, %c0_4] : memref<36x16xbf16, #tpu.memory_space<vmem>>, vector<36x16xbf16>
    %cst = arith.constant dense<0.000000e+00> : vector<256x16xf32>
    %14 = tpu.matmul %12, %13, %cst {dimension_numbers = #tpu.dot_dimension_numbers<[1], [0], [0], [1], [0, 0, 1, 1], [], []>} : vector<256x36xbf16>, vector<36x16xbf16>, vector<256x16xf32> -> vector<256x16xf32>
    %c0_5 = arith.constant 0 : index
    %c0_6 = arith.constant 0 : index
    %15 = vector.load %arg3[%c0_5, %c0_6] : memref<1x16xf32, #tpu.memory_space<vmem>>, vector<1x16xf32>
    %16 = vector.broadcast %15 : vector<1x16xf32> to vector<256x16xf32>
    %17 = arith.addf %14, %16 : vector<256x16xf32>
    %cst_7 = arith.constant 0.000000e+00 : f32
    %18 = vector.broadcast %cst_7 : f32 to vector<256x16xf32>
    %19 = arith.maximumf %17, %18 : vector<256x16xf32>
    %cst_8 = arith.constant dense<0.000000e+00> : vector<16xf32>
    %20 = vector.multi_reduction <add>, %19, %cst_8 [0] : vector<256x16xf32> to vector<16xf32>
    %21 = vector.shape_cast %20 : vector<16xf32> to vector<1x16xf32>
    %cst_9 = arith.constant 2.560000e+02 : f32
    %22 = vector.broadcast %cst_9 : f32 to vector<1x16xf32>
    %23 = arith.divf %21, %22 : vector<1x16xf32>
    %c0_10 = arith.constant 0 : index
    %c0_11 = arith.constant 0 : index
    %24 = vector.load %arg4[%c0_10, %c0_11] : memref<16x32xf32, #tpu.memory_space<vmem>>, vector<16x32xf32>
    %cst_12 = arith.constant dense<0.000000e+00> : vector<1x32xf32>
    %25 = tpu.matmul %23, %24, %cst_12 {dimension_numbers = #tpu.dot_dimension_numbers<[1], [0], [0], [1], [0, 0, 1, 1], [], []>} : vector<1x16xf32>, vector<16x32xf32>, vector<1x32xf32> -> vector<1x32xf32>
    %c0_13 = arith.constant 0 : index
    %c0_14 = arith.constant 0 : index
    %26 = vector.load %arg5[%c0_13, %c0_14] : memref<1x32xf32, #tpu.memory_space<vmem>>, vector<1x32xf32>
    %27 = arith.addf %25, %26 : vector<1x32xf32>
    %c0_15 = arith.constant 0 : index
    %c0_16 = arith.constant 0 : index
    %c0_17 = arith.constant 0 : index
    %28 = vector.load %arg6[%c0_15, %c0_16, %c0_17] : memref<1x1x32xf32, #tpu.memory_space<vmem>>, vector<1x1x32xf32>
    %29 = vector.shape_cast %28 : vector<1x1x32xf32> to vector<1x32xf32>
    %30 = vector.shape_cast %27 : vector<1x32xf32> to vector<1x1x32xf32>
    tpu.vector_store %arg6[%c0_15, %c0_16, %c0_17], %30 {strides = array<i32>} : memref<1x1x32xf32, #tpu.memory_space<vmem>>, vector<1x1x32xf32>,
    return
  }
  func.func @transform_0(%arg0: i32) -> (i32, i32, i32, i32) {
    %c0_i32 = arith.constant 0 : i32
    %c0_i32_0 = arith.constant 0 : i32
    %c0_i32_1 = arith.constant 0 : i32
    %c0_i32_2 = arith.constant 0 : i32
    return %arg0, %c0_i32, %c0_i32_0, %c0_i32_1 : i32, i32, i32, i32
  }
  func.func @transform_1(%arg0: i32) -> (i32, i32) {
    %c0_i32 = arith.constant 0 : i32
    %c0_i32_0 = arith.constant 0 : i32
    %c0_i32_1 = arith.constant 0 : i32
    return %c0_i32, %c0_i32_0 : i32, i32
  }
  func.func @transform_2(%arg0: i32) -> (i32, i32) {
    %c0_i32 = arith.constant 0 : i32
    %c0_i32_0 = arith.constant 0 : i32
    %c0_i32_1 = arith.constant 0 : i32
    return %c0_i32, %c0_i32_0 : i32, i32
  }
  func.func @transform_3(%arg0: i32) -> (i32, i32) {
    %c0_i32 = arith.constant 0 : i32
    %c0_i32_0 = arith.constant 0 : i32
    %c0_i32_1 = arith.constant 0 : i32
    return %c0_i32, %c0_i32_0 : i32, i32
  }
  func.func @transform_4(%arg0: i32) -> (i32, i32) {
    %c0_i32 = arith.constant 0 : i32
    %c0_i32_0 = arith.constant 0 : i32
    %c0_i32_1 = arith.constant 0 : i32
    return %c0_i32, %c0_i32_0 : i32, i32
  }
  func.func @transform_5(%arg0: i32) -> (i32, i32, i32) {
    %c0_i32 = arith.constant 0 : i32
    %c0_i32_0 = arith.constant 0 : i32
    %c0_i32_1 = arith.constant 0 : i32
    return %arg0, %c0_i32, %c0_i32_0 : i32, i32, i32
  }
}

</mosaic_0001>

<llo_original>
// kernel: tpu_custom_call.1
$region0: #{tpu_custom_call.1}
  #allocation0 [shape = 'u32[]', space=smem, size = 0x4, offset = 0x4, fixed_abs, tag = 'smem constant byte address 0x4 - core index']
  #allocation1 [shape = 'u32[144,128]{1,0:T(1,128)}', space=vmem, size = 0x12000, scoped, tag = 'internal scratch']
  %s0 = inlined_call_operand.vmem [shape: bf16[2,18,18,4], index: 0, kind: input, shape index: {}]
  %s1 = inlined_call_operand.vmem [shape: bf16[36,16], index: 1, kind: input, shape index: {}]
  %s2 = inlined_call_operand.vmem [shape: f32[1,16], index: 2, kind: input, shape index: {}]
  %s3 = inlined_call_operand.vmem [shape: f32[16,32], index: 3, kind: input, shape index: {}]
  %s4 = inlined_call_operand.vmem [shape: f32[1,32], index: 4, kind: input, shape index: {}]
  %s5 = inlined_call_operand.hbm [shape: f32[2,1,32], index: 5, kind: output, shape index: {}]
  %s6 = sld [smem:[#allocation0]]
  $region53: #{tpu_custom_call.1} parent=0
    _
  %s8 = ssub.s32 1, %s6
  %s9 = scalar_select 0, %s8, %s6
  $region1: #{tpu_custom_call.1} parent=0
    #allocation2 [shape = 'u8[1024]{0}', space=vmem, size = 0x400, scoped, tag = 'output window, operand 0']
    #allocation3 [shape = 's32[2]{0}', space=sflag, size = 0x8, scoped, tag = 'scoped memory for tpu_custom_call.1']
    %10 = vsyncpa [#allocation3], 0
    %s11 = scalar_lea.sflag [#allocation3], 1
    %12 = vsyncpa %s11, 0
    loop: start=0, step=1, limit=4
    $region2: #{tpu_custom_call.1} parent=1 // loop_pre_header
      _
    $region3: #{tpu_custom_call.1} parent=1 // loop_header
      %s14 = sphi 0, %s18
      %p15 = scmp.ge.s32.totalorder %s14, 4
      %s24 = sphi 0, %s26
      %s27 = sphi 0, %s24
      %s28 = sphi 0, %s27
      %s44 = sphi 0, %s28
      %s48 = sphi 0, %s48
      %s50 = sphi 0, %s48
      %s51 = sphi 0, %s50
      %s65 = sphi 0, %s51
      %s69 = sphi 0, %s69
      %s71 = sphi 0, %s69
      %s72 = sphi 0, %s71
      %s86 = sphi 0, %s72
      %s90 = sphi 0, %s90
      %s92 = sphi 0, %s90
      %s93 = sphi 0, %s92
      %s107 = sphi 0, %s93
      %s111 = sphi 0, %s111
      %s113 = sphi 0, %s111
      %s114 = sphi 0, %s113
      %s128 = sphi 0, %s114
      %s134 = sphi 0, %s136
      %s137 = sphi 0, %s134
      %s138 = sphi 0, %s137
      %s154 = sphi 0, %s138
    $region4: #{tpu_custom_call.1} parent=1 // loop_header_branch
      %17 = sbr.rel (%p15) target = $region8
    $region5: #{tpu_custom_call.1} parent=1 // loop_body
      %s19 = ssub.s32 %s14, 1
      %s20 = ssub.s32 %s14, 2
      %s21 = sadd.s32 %s14, 1
      %s22 = ssub.s32 %s14, %s21
      %p23 = scmp.eq.s32.totalorder %s22, 0
      %s25 = sadd.s32 %s24, 1
      %s26 = scalar_select %p23, %s24, %s25
      %p29 = pneg %p23
      %p30 = scmp.eq.s32.totalorder %s14, 1
      %p31 = por %p29, %p30
      %p32 = scmp.ne.s32.totalorder %s24, %s27
      %p33 = scmp.eq.s32.totalorder %s14, 0
      %p34 = por %p32, %p33
      %p35 = scmp.ne.s32.totalorder %s24, %s27
      %p36 = scmp.eq.s32.totalorder %s19, 1
      %p37 = por %p35, %p36
      %p38 = scmp.ne.s32.totalorder %s27, %s28
      %p39 = scmp.eq.s32.totalorder %s19, 0
      %p40 = por %p38, %p39
      %p41 = scmp.ne.s32.totalorder %s27, %s28
      %p42 = scmp.eq.s32.totalorder %s20, 1
      %p43 = por %p41, %p42
      %p45 = scmp.ne.s32.totalorder %s28, %s44
      %p46 = scmp.eq.s32.totalorder %s20, 0
      %p47 = por %p45, %p46
      %s49 = sadd.s32 %s48, 1
      %p52 = scmp.eq.s32.totalorder %s14, 1
      %p53 = scmp.ne.s32.totalorder %s48, %s50
      %p54 = scmp.eq.s32.totalorder %s14, 0
      %p55 = por %p53, %p54
      %p56 = scmp.ne.s32.totalorder %s48, %s50
      %p57 = scmp.eq.s32.totalorder %s19, 1
      %p58 = por %p56, %p57
      %p59 = scmp.ne.s32.totalorder %s50, %s51
      %p60 = scmp.eq.s32.totalorder %s19, 0
      %p61 = por %p59, %p60
      %p62 = scmp.ne.s32.totalorder %s50, %s51
      %p63 = scmp.eq.s32.totalorder %s20, 1
      %p64 = por %p62, %p63
      %p66 = scmp.ne.s32.totalorder %s51, %s65
      %p67 = scmp.eq.s32.totalorder %s20, 0
      %p68 = por %p66, %p67
      %s70 = sadd.s32 %s69, 1
      %p73 = scmp.eq.s32.totalorder %s14, 1
      %p74 = scmp.ne.s32.totalorder %s69, %s71
      %p75 = scmp.eq.s32.totalorder %s14, 0
      %p76 = por %p74, %p75
      %p77 = scmp.ne.s32.totalorder %s69, %s71
      %p78 = scmp.eq.s32.totalorder %s19, 1
      %p79 = por %p77, %p78
      %p80 = scmp.ne.s32.totalorder %s71, %s72
      %p81 = scmp.eq.s32.totalorder %s19, 0
      %p82 = por %p80, %p81
      %p83 = scmp.ne.s32.totalorder %s71, %s72
      %p84 = scmp.eq.s32.totalorder %s20, 1
      %p85 = por %p83, %p84
      %p87 = scmp.ne.s32.totalorder %s72, %s86
      %p88 = scmp.eq.s32.totalorder %s20, 0
      %p89 = por %p87, %p88
      %s91 = sadd.s32 %s90, 1
      %p94 = scmp.eq.s32.totalorder %s14, 1
      %p95 = scmp.ne.s32.totalorder %s90, %s92
      %p96 = scmp.eq.s32.totalorder %s14, 0
      %p97 = por %p95, %p96
      %p98 = scmp.ne.s32.totalorder %s90, %s92
      %p99 = scmp.eq.s32.totalorder %s19, 1
      %p100 = por %p98, %p99
      %p101 = scmp.ne.s32.totalorder %s92, %s93
      %p102 = scmp.eq.s32.totalorder %s19, 0
      %p103 = por %p101, %p102
      %p104 = scmp.ne.s32.totalorder %s92, %s93
      %p105 = scmp.eq.s32.totalorder %s20, 1
      %p106 = por %p104, %p105
      %p108 = scmp.ne.s32.totalorder %s93, %s107
      %p109 = scmp.eq.s32.totalorder %s20, 0
      %p110 = por %p108, %p109
      %s112 = sadd.s32 %s111, 1
      %p115 = scmp.eq.s32.totalorder %s14, 1
      %p116 = scmp.ne.s32.totalorder %s111, %s113
      %p117 = scmp.eq.s32.totalorder %s14, 0
      %p118 = por %p116, %p117
      %p119 = scmp.ne.s32.totalorder %s111, %s113
      %p120 = scmp.eq.s32.totalorder %s19, 1
      %p121 = por %p119, %p120
      %p122 = scmp.ne.s32.totalorder %s113, %s114
      %p123 = scmp.eq.s32.totalorder %s19, 0
      %p124 = por %p122, %p123
      %p125 = scmp.ne.s32.totalorder %s113, %s114
      %p126 = scmp.eq.s32.totalorder %s20, 1
      %p127 = por %p125, %p126
      %p129 = scmp.ne.s32.totalorder %s114, %s128
      %p130 = scmp.eq.s32.totalorder %s20, 0
      %p131 = por %p129, %p130
      %s132 = ssub.s32 %s14, %s21
      %p133 = scmp.eq.s32.totalorder %s132, 0
      %s135 = sadd.s32 %s134, 1
      %s136 = scalar_select %p133, %s134, %s135
      %p139 = pneg %p133
      %p140 = scmp.eq.s32.totalorder %s14, 1
      %p141 = por %p139, %p140
      %p142 = scmp.ne.s32.totalorder %s134, %s137
      %p143 = scmp.eq.s32.totalorder %s14, 0
      %p144 = por %p142, %p143
      %p145 = scmp.ne.s32.totalorder %s134, %s137
      %p146 = scmp.eq.s32.totalorder %s19, 1
      %p147 = por %p145, %p146
      %p148 = scmp.ne.s32.totalorder %s137, %s138
      %p149 = scmp.eq.s32.totalorder %s19, 0
      %p150 = por %p148, %p149
      %p151 = scmp.ne.s32.totalorder %s137, %s138
      %p152 = scmp.eq.s32.totalorder %s20, 1
      %p153 = por %p151, %p152
      %p155 = scmp.ne.s32.totalorder %s138, %s154
      %p156 = scmp.eq.s32.totalorder %s20, 0
      %p157 = por %p155, %p156
      %p158 = scmp.le.s32.totalorder 1, %s14
      %p159 = scmp.lt.s32.totalorder %s14, 3
      %p160 = pnand %p158, %p159
      %p161 = pneg %p160
      // Predicated region
      $region9: #{tpu_custom_call.1} parent=5 // pred_check
        _
      $region10: #{tpu_custom_call.1} parent=5 // pred_check_branch
        %163 = sbr.rel (%p160) target = $region12
      $region11: #{tpu_custom_call.1} parent=5 // pred_region
        %s164 = ssub.s32 %s14, 1
        // Predicated region
        $region13: #{tpu_custom_call.1} parent=11 // pred_check
          %p165 = pneg %p61
        $region14: #{tpu_custom_call.1} parent=11 // pred_check_branch
          %167 = sbr.rel (%p165) target = $region16
        $region15: #{tpu_custom_call.1} parent=11 // pred_region
          _
        $region16: #{tpu_custom_call.1} parent=11 // pred_fallthru
          _
        // Predicated region
        $region17: #{tpu_custom_call.1} parent=11 // pred_check
          %p168 = pneg %p82
        $region18: #{tpu_custom_call.1} parent=11 // pred_check_branch
          %170 = sbr.rel (%p168) target = $region20
        $region19: #{tpu_custom_call.1} parent=11 // pred_region
          _
        $region20: #{tpu_custom_call.1} parent=11 // pred_fallthru
          _
        // Predicated region
        $region21: #{tpu_custom_call.1} parent=11 // pred_check
          %p171 = pneg %p103
        $region22: #{tpu_custom_call.1} parent=11 // pred_check_branch
          %173 = sbr.rel (%p171) target = $region24
        $region23: #{tpu_custom_call.1} parent=11 // pred_region
          _
        $region24: #{tpu_custom_call.1} parent=11 // pred_fallthru
          _
        // Predicated region
        $region25: #{tpu_custom_call.1} parent=11 // pred_check
          %p174 = pneg %p124
        $region26: #{tpu_custom_call.1} parent=11 // pred_check_branch
          %176 = sbr.rel (%p174) target = $region28
        $region27: #{tpu_custom_call.1} parent=11 // pred_region
          _
        $region28: #{tpu_custom_call.1} parent=11 // pred_fallthru
          _
      $region12: #{tpu_custom_call.1} parent=5 // pred_fallthru
        _
      %p177 = scmp.lt.s32.totalorder %s14, 2
      // Predicated region
      $region29: #{tpu_custom_call.1} parent=5 // pred_check
        %p178 = pneg %p177
      $region30: #{tpu_custom_call.1} parent=5 // pred_check_branch
        %180 = sbr.rel (%p178) target = $region32
      $region31: #{tpu_custom_call.1} parent=5 // pred_region
        // Predicated region
        $region33: #{tpu_custom_call.1} parent=31 // pred_check
          %p181 = pneg %p34
        $region34: #{tpu_custom_call.1} parent=31 // pred_check_branch
          %183 = sbr.rel (%p181) target = $region36
        $region35: #{tpu_custom_call.1} parent=31 // pred_region
          %p184 = scmp.lt.s32.totalorder %s14, 1
          %s185 = scalar_select %p184, %s14, 1
          %s186 = smul.addr %s185, 54
          %s187 = smul.addr %s186, 4
          %s188 = scalar_lea.vmem %s0, %s187
        $region36: #{tpu_custom_call.1} parent=31 // pred_fallthru
          _
      $region32: #{tpu_custom_call.1} parent=5 // pred_fallthru
        _
      %p189 = scmp.le.s32.totalorder 1, %s14
      %p190 = scmp.lt.s32.totalorder %s14, 3
      %p191 = pnand %p189, %p190
      %p192 = pneg %p191
      // Predicated region
      $region37: #{tpu_custom_call.1} parent=5 // pred_check
        _
      $region38: #{tpu_custom_call.1} parent=5 // pred_check_branch
        %194 = sbr.rel (%p191) target = $region40
      $region39: #{tpu_custom_call.1} parent=5 // pred_region
        %s195 = ssub.s32 %s14, 1
        %p196 = scmp.lt.s32.totalorder %s19, 1
        %s197 = scalar_select %p196, %s19, 1
        %s198 = smul.addr %s197, 54
        %s199 = smul.addr %s198, 4
        %s200 = scalar_lea.vmem %s0, %s199
        %p201 = pneg %p40
        %p202 = pneg %p37
        %p203 = pneg %p61
        %p204 = pneg %p58
        %p205 = pneg %p82
        %p206 = pneg %p79
        %p207 = pneg %p103
        %p208 = pneg %p100
        %p209 = pneg %p124
        %p210 = pneg %p121
        %p211 = pneg %p150
        %p212 = pneg %p147
        %s213 = sand.u32 %s137, 1
        %s214 = scalar_lea.sflag [#allocation3], %s213
        %s215 = sand.u32 %s137, 1
        %s216 = scalar_lea.vmem [#allocation2], %s215
        %p217 = scmp.lt.s32.totalorder %s19, 1
        %s218 = scalar_select %p217, %s19, 1
        %s219 = smul.addr %s218, 54
        %s220 = smul.addr %s219, 4
        %s221 = scalar_lea.vmem %s0, %s220
        %v223 = vld [vmem:[%s221] sm:$0xf]
        %v224 = vld [vmem:[%s221 + $0x4] sm:$0xf]
        %v225 = vld [vmem:[%s221 + $0x8] sm:$0x1]
        %v226 = vld [vmem:[%s221 + $0xc] sm:$0xf]
        %v227 = vld [vmem:[%s221 + $0x10] sm:$0xf]
        %v228 = vld [vmem:[%s221 + $0x14] sm:$0x1]
        %v229 = vld [vmem:[%s221 + $0x18] sm:$0xf]
        %v230 = vld [vmem:[%s221 + $0x1c] sm:$0xf]
        %v231 = vld [vmem:[%s221 + $0x20] sm:$0x1]
        %v232 = vld [vmem:[%s221 + $0x24] sm:$0xf]
        %v233 = vld [vmem:[%s221 + $0x28] sm:$0xf]
        %v234 = vld [vmem:[%s221 + $0x2c] sm:$0x1]
        %v235 = vld [vmem:[%s221 + $0x30] sm:$0xf]
        %v236 = vld [vmem:[%s221 + $0x34] sm:$0xf]
        %v237 = vld [vmem:[%s221 + $0x38] sm:$0x1]
        %v238 = vld [vmem:[%s221 + $0x3c] sm:$0xf]
        %v239 = vld [vmem:[%s221 + $0x40] sm:$0xf]
        %v240 = vld [vmem:[%s221 + $0x44] sm:$0x1]
        %v241 = vld [vmem:[%s221 + $0x48] sm:$0xf]
        %v242 = vld [vmem:[%s221 + $0x4c] sm:$0xf]
        %v243 = vld [vmem:[%s221 + $0x50] sm:$0x1]
        %v244 = vld [vmem:[%s221 + $0x54] sm:$0xf]
        %v245 = vld [vmem:[%s221 + $0x58] sm:$0xf]
        %v246 = vld [vmem:[%s221 + $0x5c] sm:$0x1]
        %v247 = vld [vmem:[%s221 + $0x60] sm:$0xf]
        %v248 = vld [vmem:[%s221 + $0x64] sm:$0xf]
        %v249 = vld [vmem:[%s221 + $0x68] sm:$0x1]
        %v250 = vld [vmem:[%s221 + $0x6c] sm:$0xf]
        %v251 = vld [vmem:[%s221 + $0x70] sm:$0xf]
        %v252 = vld [vmem:[%s221 + $0x74] sm:$0x1]
        %v253 = vld [vmem:[%s221 + $0x78] sm:$0xf]
        %v254 = vld [vmem:[%s221 + $0x7c] sm:$0xf]
        %v255 = vld [vmem:[%s221 + $0x80] sm:$0x1]
        %v256 = vld [vmem:[%s221 + $0x84] sm:$0xf]
        %v257 = vld [vmem:[%s221 + $0x88] sm:$0xf]
        %v258 = vld [vmem:[%s221 + $0x8c] sm:$0x1]
        %v259 = vld [vmem:[%s221 + $0x90] sm:$0xf]
        %v260 = vld [vmem:[%s221 + $0x94] sm:$0xf]
        %v261 = vld [vmem:[%s221 + $0x98] sm:$0x1]
        %v262 = vld [vmem:[%s221 + $0x9c] sm:$0xf]
        %v263 = vld [vmem:[%s221 + $0xa0] sm:$0xf]
        %v264 = vld [vmem:[%s221 + $0xa4] sm:$0x1]
        %v265 = vld [vmem:[%s221 + $0xa8] sm:$0xf]
        %v266 = vld [vmem:[%s221 + $0xac] sm:$0xf]
        %v267 = vld [vmem:[%s221 + $0xb0] sm:$0x1]
        %v268 = vld [vmem:[%s221 + $0xb4] sm:$0xf]
        %v269 = vld [vmem:[%s221 + $0xb8] sm:$0xf]
        %v270 = vld [vmem:[%s221 + $0xbc] sm:$0x1]
        %v271 = vld [vmem:[%s221 + $0xc0] sm:$0xf]
        %v272 = vld [vmem:[%s221 + $0xc4] sm:$0xf]
        %v273 = vld [vmem:[%s221 + $0xc8] sm:$0x1]
        %v274 = vld [vmem:[%s221 + $0xcc] sm:$0xf]
        %v275 = vld [vmem:[%s221 + $0xd0] sm:$0xf]
        %v276 = vld [vmem:[%s221 + $0xd4] sm:$0x1]
        %v309 = vunpack.c.l.b16 %v223
        %v310 = vunpack.c.l.b16 %v224
        %v311 = vunpack.c.l.b16 %v226
        %v312 = vunpack.c.l.b16 %v227
        %v313 = vunpack.c.l.b16 %v229
        %v314 = vunpack.c.l.b16 %v230
        %v315 = vunpack.c.l.b16 %v232
        %v316 = vunpack.c.l.b16 %v233
        %v317 = vunpack.c.l.b16 %v235
        %v318 = vunpack.c.l.b16 %v236
        %v319 = vunpack.c.l.b16 %v238
        %v320 = vunpack.c.l.b16 %v239
        %v321 = vunpack.c.l.b16 %v241
        %v322 = vunpack.c.l.b16 %v242
        %v323 = vunpack.c.l.b16 %v244
        %v324 = vunpack.c.l.b16 %v245
        %v325 = vunpack.c.l.b16 %v247
        %v326 = vunpack.c.l.b16 %v248
        %v327 = vunpack.c.l.b16 %v250
        %v328 = vunpack.c.l.b16 %v251
        %v329 = vunpack.c.l.b16 %v253
        %v330 = vunpack.c.l.b16 %v254
        %v331 = vunpack.c.l.b16 %v256
        %v332 = vunpack.c.l.b16 %v257
        %v333 = vunpack.c.l.b16 %v259
        %v334 = vunpack.c.l.b16 %v260
        %v335 = vunpack.c.l.b16 %v262
        %v336 = vunpack.c.l.b16 %v263
        %v337 = vunpack.c.l.b16 %v265
        %v338 = vunpack.c.l.b16 %v266
        %v339 = vunpack.c.l.b16 %v268
        %v340 = vunpack.c.l.b16 %v269
        %v341 = vpack.c.b16 %v310, %v309
        %v342 = vpack.c.b16 %v312, %v311
        %v343 = vpack.c.b16 %v314, %v313
        %v344 = vpack.c.b16 %v316, %v315
        %v345 = vpack.c.b16 %v318, %v317
        %v346 = vpack.c.b16 %v320, %v319
        %v347 = vpack.c.b16 %v322, %v321
        %v348 = vpack.c.b16 %v324, %v323
        %v349 = vpack.c.b16 %v326, %v325
        %v350 = vpack.c.b16 %v328, %v327
        %v351 = vpack.c.b16 %v330, %v329
        %v352 = vpack.c.b16 %v332, %v331
        %v353 = vpack.c.b16 %v334, %v333
        %v354 = vpack.c.b16 %v336, %v335
        %v355 = vpack.c.b16 %v338, %v337
        %v356 = vpack.c.b16 %v340, %v339
        %v373 = vunpack.c.l.b16 %v225
        %v374 = vunpack.c.l.b16 %v228
        %v375 = vunpack.c.l.b16 %v231
        %v376 = vunpack.c.l.b16 %v234
        %v377 = vunpack.c.l.b16 %v237
        %v378 = vunpack.c.l.b16 %v240
        %v379 = vunpack.c.l.b16 %v243
        %v380 = vunpack.c.l.b16 %v246
        %v381 = vunpack.c.l.b16 %v249
        %v382 = vunpack.c.l.b16 %v252
        %v383 = vunpack.c.l.b16 %v255
        %v384 = vunpack.c.l.b16 %v258
        %v385 = vunpack.c.l.b16 %v261
        %v386 = vunpack.c.l.b16 %v264
        %v387 = vunpack.c.l.b16 %v267
        %v388 = vunpack.c.l.b16 %v270
        %v389 = vpack.c.b16 %v373, %v373
        %v390 = vpack.c.b16 %v374, %v374
        %v391 = vpack.c.b16 %v375, %v375
        %v392 = vpack.c.b16 %v376, %v376
        %v393 = vpack.c.b16 %v377, %v377
        %v394 = vpack.c.b16 %v378, %v378
        %v395 = vpack.c.b16 %v379, %v379
        %v396 = vpack.c.b16 %v380, %v380
        %v397 = vpack.c.b16 %v381, %v381
        %v398 = vpack.c.b16 %v382, %v382
        %v399 = vpack.c.b16 %v383, %v383
        %v400 = vpack.c.b16 %v384, %v384
        %v401 = vpack.c.b16 %v385, %v385
        %v402 = vpack.c.b16 %v386, %v386
        %v403 = vpack.c.b16 %v387, %v387
        %v404 = vpack.c.b16 %v388, %v388
        %vm405 = vsmask.f32 7424
        %v407 = vshrl.u32 %v341, 16
        %v409 = vshll.u32 %v341, 16
        %v411 = vrot.slane %v409, 1
        %v412 = vor.u32 %v407, %v411
        %v414 = vshll.u32 %v389, 16
        %v416 = vrot.slane %v414, 1
        %v417 = vsel %vm405, %v412, %v416
        %v419 = vshrl.u32 %v342, 16
        %v421 = vshll.u32 %v342, 16
        %v423 = vrot.slane %v421, 1
        %v424 = vor.u32 %v419, %v423
        %v426 = vshll.u32 %v390, 16
        %v428 = vrot.slane %v426, 1
        %v429 = vsel %vm405, %v424, %v428
        %v431 = vshrl.u32 %v343, 16
        %v433 = vshll.u32 %v343, 16
        %v435 = vrot.slane %v433, 1
        %v436 = vor.u32 %v431, %v435
        %v438 = vshll.u32 %v391, 16
        %v440 = vrot.slane %v438, 1
        %v441 = vsel %vm405, %v436, %v440
        %v443 = vshrl.u32 %v344, 16
        %v445 = vshll.u32 %v344, 16
        %v447 = vrot.slane %v445, 1
        %v448 = vor.u32 %v443, %v447
        %v450 = vshll.u32 %v392, 16
        %v452 = vrot.slane %v450, 1
        %v453 = vsel %vm405, %v448, %v452
        %v455 = vshrl.u32 %v345, 16
        %v457 = vshll.u32 %v345, 16
        %v459 = vrot.slane %v457, 1
        %v460 = vor.u32 %v455, %v459
        %v462 = vshll.u32 %v393, 16
        %v464 = vrot.slane %v462, 1
        %v465 = vsel %vm405, %v460, %v464
        %v467 = vshrl.u32 %v346, 16
        %v469 = vshll.u32 %v346, 16
        %v471 = vrot.slane %v469, 1
        %v472 = vor.u32 %v467, %v471
        %v474 = vshll.u32 %v394, 16
        %v476 = vrot.slane %v474, 1
        %v477 = vsel %vm405, %v472, %v476
        %v479 = vshrl.u32 %v347, 16
        %v481 = vshll.u32 %v347, 16
        %v483 = vrot.slane %v481, 1
        %v484 = vor.u32 %v479, %v483
        %v486 = vshll.u32 %v395, 16
        %v488 = vrot.slane %v486, 1
        %v489 = vsel %vm405, %v484, %v488
        %v491 = vshrl.u32 %v348, 16
        %v493 = vshll.u32 %v348, 16
        %v495 = vrot.slane %v493, 1
        %v496 = vor.u32 %v491, %v495
        %v498 = vshll.u32 %v396, 16
        %v500 = vrot.slane %v498, 1
        %v501 = vsel %vm405, %v496, %v500
        %v503 = vshrl.u32 %v349, 16
        %v505 = vshll.u32 %v349, 16
        %v507 = vrot.slane %v505, 1
        %v508 = vor.u32 %v503, %v507
        %v510 = vshll.u32 %v397, 16
        %v512 = vrot.slane %v510, 1
        %v513 = vsel %vm405, %v508, %v512
        %v515 = vshrl.u32 %v350, 16
        %v517 = vshll.u32 %v350, 16
        %v519 = vrot.slane %v517, 1
        %v520 = vor.u32 %v515, %v519
        %v522 = vshll.u32 %v398, 16
        %v524 = vrot.slane %v522, 1
        %v525 = vsel %vm405, %v520, %v524
        %v527 = vshrl.u32 %v351, 16
        %v529 = vshll.u32 %v351, 16
        %v531 = vrot.slane %v529, 1
        %v532 = vor.u32 %v527, %v531
        %v534 = vshll.u32 %v399, 16
        %v536 = vrot.slane %v534, 1
        %v537 = vsel %vm405, %v532, %v536
        %v539 = vshrl.u32 %v352, 16
        %v541 = vshll.u32 %v352, 16
        %v543 = vrot.slane %v541, 1
        %v544 = vor.u32 %v539, %v543
        %v546 = vshll.u32 %v400, 16
        %v548 = vrot.slane %v546, 1
        %v549 = vsel %vm405, %v544, %v548
        %v551 = vshrl.u32 %v353, 16
        %v553 = vshll.u32 %v353, 16
        %v555 = vrot.slane %v553, 1
        %v556 = vor.u32 %v551, %v555
        %v558 = vshll.u32 %v401, 16
        %v560 = vrot.slane %v558, 1
        %v561 = vsel %vm405, %v556, %v560
        %v563 = vshrl.u32 %v354, 16
        %v565 = vshll.u32 %v354, 16
        %v567 = vrot.slane %v565, 1
        %v568 = vor.u32 %v563, %v567
        %v570 = vshll.u32 %v402, 16
        %v572 = vrot.slane %v570, 1
        %v573 = vsel %vm405, %v568, %v572
        %v575 = vshrl.u32 %v355, 16
        %v577 = vshll.u32 %v355, 16
        %v579 = vrot.slane %v577, 1
        %v580 = vor.u32 %v575, %v579
        %v582 = vshll.u32 %v403, 16
        %v584 = vrot.slane %v582, 1
        %v585 = vsel %vm405, %v580, %v584
        %v587 = vshrl.u32 %v356, 16
        %v589 = vshll.u32 %v356, 16
        %v591 = vrot.slane %v589, 1
        %v592 = vor.u32 %v587, %v591
        %v594 = vshll.u32 %v404, 16
        %v596 = vrot.slane %v594, 1
        %v597 = vsel %vm405, %v592, %v596
        %598 = vrot.lane.b32.xlu0 %v417, 4
        %v599 = vpop.permute.xlu0 %598
        %600 = vrot.lane.b32.xlu0 %v429, 4
        %v601 = vpop.permute.xlu0 %600
        %602 = vrot.lane.b32.xlu0 %v441, 4
        %v603 = vpop.permute.xlu0 %602
        %604 = vrot.lane.b32.xlu0 %v453, 4
        %v605 = vpop.permute.xlu0 %604
        %606 = vrot.lane.b32.xlu0 %v465, 4
        %v607 = vpop.permute.xlu0 %606
        %608 = vrot.lane.b32.xlu0 %v477, 4
        %v609 = vpop.permute.xlu0 %608
        %610 = vrot.lane.b32.xlu0 %v489, 4
        %v611 = vpop.permute.xlu0 %610
        %612 = vrot.lane.b32.xlu0 %v501, 4
        %v613 = vpop.permute.xlu0 %612
        %614 = vrot.lane.b32.xlu0 %v513, 4
        %v615 = vpop.permute.xlu0 %614
        %616 = vrot.lane.b32.xlu0 %v525, 4
        %v617 = vpop.permute.xlu0 %616
        %618 = vrot.lane.b32.xlu0 %v537, 4
        %v619 = vpop.permute.xlu0 %618
        %620 = vrot.lane.b32.xlu0 %v549, 4
        %v621 = vpop.permute.xlu0 %620
        %622 = vrot.lane.b32.xlu0 %v561, 4
        %v623 = vpop.permute.xlu0 %622
        %624 = vrot.lane.b32.xlu0 %v573, 4
        %v625 = vpop.permute.xlu0 %624
        %626 = vrot.lane.b32.xlu0 %v585, 4
        %v627 = vpop.permute.xlu0 %626
        %628 = vrot.lane.b32.xlu0 %v597, 4
        %v629 = vpop.permute.xlu0 %628
        %vm630 = vcmask 1046528
        %v631 = vrot.slane %v341, 1
        %v632 = vrot.slane %v389, 1
        %v633 = vsel %vm630, %v631, %v632
        %v634 = vrot.slane %v342, 1
        %v635 = vrot.slane %v390, 1
        %v636 = vsel %vm630, %v634, %v635
        %v637 = vrot.slane %v343, 1
        %v638 = vrot.slane %v391, 1
        %v639 = vsel %vm630, %v637, %v638
        %v640 = vrot.slane %v344, 1
        %v641 = vrot.slane %v392, 1
        %v642 = vsel %vm630, %v640, %v641
        %v643 = vrot.slane %v345, 1
        %v644 = vrot.slane %v393, 1
        %v645 = vsel %vm630, %v643, %v644
        %v646 = vrot.slane %v346, 1
        %v647 = vrot.slane %v394, 1
        %v648 = vsel %vm630, %v646, %v647
        %v649 = vrot.slane %v347, 1
        %v650 = vrot.slane %v395, 1
        %v651 = vsel %vm630, %v649, %v650
        %v652 = vrot.slane %v348, 1
        %v653 = vrot.slane %v396, 1
        %v654 = vsel %vm630, %v652, %v653
        %v655 = vrot.slane %v349, 1
        %v656 = vrot.slane %v397, 1
        %v657 = vsel %vm630, %v655, %v656
        %v658 = vrot.slane %v350, 1
        %v659 = vrot.slane %v398, 1
        %v660 = vsel %vm630, %v658, %v659
        %v661 = vrot.slane %v351, 1
        %v662 = vrot.slane %v399, 1
        %v663 = vsel %vm630, %v661, %v662
        %v664 = vrot.slane %v352, 1
        %v665 = vrot.slane %v400, 1
        %v666 = vsel %vm630, %v664, %v665
        %v667 = vrot.slane %v353, 1
        %v668 = vrot.slane %v401, 1
        %v669 = vsel %vm630, %v667, %v668
        %v670 = vrot.slane %v354, 1
        %v671 = vrot.slane %v402, 1
        %v672 = vsel %vm630, %v670, %v671
        %v673 = vrot.slane %v355, 1
        %v674 = vrot.slane %v403, 1
        %v675 = vsel %vm630, %v673, %v674
        %v676 = vrot.slane %v356, 1
        %v677 = vrot.slane %v404, 1
        %v678 = vsel %vm630, %v676, %v677
        %679 = vrot.lane.b32.xlu0 %v633, 8
        %v680 = vpop.permute.xlu0 %679
        %681 = vrot.lane.b32.xlu0 %v636, 8
        %v682 = vpop.permute.xlu0 %681
        %683 = vrot.lane.b32.xlu0 %v639, 8
        %v684 = vpop.permute.xlu0 %683
        %685 = vrot.lane.b32.xlu0 %v642, 8
        %v686 = vpop.permute.xlu0 %685
        %687 = vrot.lane.b32.xlu0 %v645, 8
        %v688 = vpop.permute.xlu0 %687
        %689 = vrot.lane.b32.xlu0 %v648, 8
        %v690 = vpop.permute.xlu0 %689
        %691 = vrot.lane.b32.xlu0 %v651, 8
        %v692 = vpop.permute.xlu0 %691
        %693 = vrot.lane.b32.xlu0 %v654, 8
        %v694 = vpop.permute.xlu0 %693
        %695 = vrot.lane.b32.xlu0 %v657, 8
        %v696 = vpop.permute.xlu0 %695
        %697 = vrot.lane.b32.xlu0 %v660, 8
        %v698 = vpop.permute.xlu0 %697
        %699 = vrot.lane.b32.xlu0 %v663, 8
        %v700 = vpop.permute.xlu0 %699
        %701 = vrot.lane.b32.xlu0 %v666, 8
        %v702 = vpop.permute.xlu0 %701
        %703 = vrot.lane.b32.xlu0 %v669, 8
        %v704 = vpop.permute.xlu0 %703
        %705 = vrot.lane.b32.xlu0 %v672, 8
        %v706 = vpop.permute.xlu0 %705
        %707 = vrot.lane.b32.xlu0 %v675, 8
        %v708 = vpop.permute.xlu0 %707
        %709 = vrot.lane.b32.xlu0 %v678, 8
        %v710 = vpop.permute.xlu0 %709
        %v713 = vunpack.c.l.b16 %v271
        %v714 = vunpack.c.l.b16 %v272
        %v715 = vpack.c.b16 %v714, %v713
        %716 = vrot.lane.b32.xlu0 %v342, 12
        %v717 = vpop.permute.xlu0 %716
        %718 = vrot.lane.b32.xlu0 %v343, 12
        %v719 = vpop.permute.xlu0 %718
        %720 = vrot.lane.b32.xlu0 %v344, 12
        %v721 = vpop.permute.xlu0 %720
        %722 = vrot.lane.b32.xlu0 %v345, 12
        %v723 = vpop.permute.xlu0 %722
        %724 = vrot.lane.b32.xlu0 %v346, 12
        %v725 = vpop.permute.xlu0 %724
        %726 = vrot.lane.b32.xlu0 %v347, 12
        %v727 = vpop.permute.xlu0 %726
        %728 = vrot.lane.b32.xlu0 %v348, 12
        %v729 = vpop.permute.xlu0 %728
        %730 = vrot.lane.b32.xlu0 %v349, 12
        %v731 = vpop.permute.xlu0 %730
        %732 = vrot.lane.b32.xlu0 %v350, 12
        %v733 = vpop.permute.xlu0 %732
        %734 = vrot.lane.b32.xlu0 %v351, 12
        %v735 = vpop.permute.xlu0 %734
        %736 = vrot.lane.b32.xlu0 %v352, 12
        %v737 = vpop.permute.xlu0 %736
        %738 = vrot.lane.b32.xlu0 %v353, 12
        %v739 = vpop.permute.xlu0 %738
        %740 = vrot.lane.b32.xlu0 %v354, 12
        %v741 = vpop.permute.xlu0 %740
        %742 = vrot.lane.b32.xlu0 %v355, 12
        %v743 = vpop.permute.xlu0 %742
        %744 = vrot.lane.b32.xlu0 %v356, 12
        %v745 = vpop.permute.xlu0 %744
        %746 = vrot.lane.b32.xlu0 %v715, 12
        %v747 = vpop.permute.xlu0 %746
        %v749 = vunpack.c.l.b16 %v273
        %v750 = vpack.c.b16 %v749, %v749
        %v752 = vshrl.u32 %v715, 16
        %v754 = vshll.u32 %v715, 16
        %v756 = vrot.slane %v754, 1
        %v757 = vor.u32 %v752, %v756
        %v759 = vshll.u32 %v750, 16
        %v761 = vrot.slane %v759, 1
        %v762 = vsel %vm405, %v757, %v761
        %763 = vrot.lane.b32.xlu0 %v429, 16
        %v764 = vpop.permute.xlu0 %763
        %765 = vrot.lane.b32.xlu0 %v441, 16
        %v766 = vpop.permute.xlu0 %765
        %767 = vrot.lane.b32.xlu0 %v453, 16
        %v768 = vpop.permute.xlu0 %767
        %769 = vrot.lane.b32.xlu0 %v465, 16
        %v770 = vpop.permute.xlu0 %769
        %771 = vrot.lane.b32.xlu0 %v477, 16
        %v772 = vpop.permute.xlu0 %771
        %773 = vrot.lane.b32.xlu0 %v489, 16
        %v774 = vpop.permute.xlu0 %773
        %775 = vrot.lane.b32.xlu0 %v501, 16
        %v776 = vpop.permute.xlu0 %775
        %777 = vrot.lane.b32.xlu0 %v513, 16
        %v778 = vpop.permute.xlu0 %777
        %779 = vrot.lane.b32.xlu0 %v525, 16
        %v780 = vpop.permute.xlu0 %779
        %781 = vrot.lane.b32.xlu0 %v537, 16
        %v782 = vpop.permute.xlu0 %781
        %783 = vrot.lane.b32.xlu0 %v549, 16
        %v784 = vpop.permute.xlu0 %783
        %785 = vrot.lane.b32.xlu0 %v561, 16
        %v786 = vpop.permute.xlu0 %785
        %787 = vrot.lane.b32.xlu0 %v573, 16
        %v788 = vpop.permute.xlu0 %787
        %789 = vrot.lane.b32.xlu0 %v585, 16
        %v790 = vpop.permute.xlu0 %789
        %791 = vrot.lane.b32.xlu0 %v597, 16
        %v792 = vpop.permute.xlu0 %791
        %793 = vrot.lane.b32.xlu0 %v762, 16
        %v794 = vpop.permute.xlu0 %793
        %v795 = vrot.slane %v715, 1
        %v796 = vrot.slane %v750, 1
        %v797 = vsel %vm630, %v795, %v796
        %798 = vrot.lane.b32.xlu0 %v636, 20
        %v799 = vpop.permute.xlu0 %798
        %800 = vrot.lane.b32.xlu0 %v639, 20
        %v801 = vpop.permute.xlu0 %800
        %802 = vrot.lane.b32.xlu0 %v642, 20
        %v803 = vpop.permute.xlu0 %802
        %804 = vrot.lane.b32.xlu0 %v645, 20
        %v805 = vpop.permute.xlu0 %804
        %806 = vrot.lane.b32.xlu0 %v648, 20
        %v807 = vpop.permute.xlu0 %806
        %808 = vrot.lane.b32.xlu0 %v651, 20
        %v809 = vpop.permute.xlu0 %808
        %810 = vrot.lane.b32.xlu0 %v654, 20
        %v811 = vpop.permute.xlu0 %810
        %812 = vrot.lane.b32.xlu0 %v657, 20
        %v813 = vpop.permute.xlu0 %812
        %814 = vrot.lane.b32.xlu0 %v660, 20
        %v815 = vpop.permute.xlu0 %814
        %816 = vrot.lane.b32.xlu0 %v663, 20
        %v817 = vpop.permute.xlu0 %816
        %818 = vrot.lane.b32.xlu0 %v666, 20
        %v819 = vpop.permute.xlu0 %818
        %820 = vrot.lane.b32.xlu0 %v669, 20
        %v821 = vpop.permute.xlu0 %820
        %822 = vrot.lane.b32.xlu0 %v672, 20
        %v823 = vpop.permute.xlu0 %822
        %824 = vrot.lane.b32.xlu0 %v675, 20
        %v825 = vpop.permute.xlu0 %824
        %826 = vrot.lane.b32.xlu0 %v678, 20
        %v827 = vpop.permute.xlu0 %826
        %828 = vrot.lane.b32.xlu0 %v797, 20
        %v829 = vpop.permute.xlu0 %828
        %v832 = vunpack.c.l.b16 %v274
        %v833 = vunpack.c.l.b16 %v275
        %v834 = vpack.c.b16 %v833, %v832
        %835 = vrot.lane.b32.xlu0 %v343, 24
        %v836 = vpop.permute.xlu0 %835
        %837 = vrot.lane.b32.xlu0 %v344, 24
        %v838 = vpop.permute.xlu0 %837
        %839 = vrot.lane.b32.xlu0 %v345, 24
        %v840 = vpop.permute.xlu0 %839
        %841 = vrot.lane.b32.xlu0 %v346, 24
        %v842 = vpop.permute.xlu0 %841
        %843 = vrot.lane.b32.xlu0 %v347, 24
        %v844 = vpop.permute.xlu0 %843
        %845 = vrot.lane.b32.xlu0 %v348, 24
        %v846 = vpop.permute.xlu0 %845
        %847 = vrot.lane.b32.xlu0 %v349, 24
        %v848 = vpop.permute.xlu0 %847
        %849 = vrot.lane.b32.xlu0 %v350, 24
        %v850 = vpop.permute.xlu0 %849
        %851 = vrot.lane.b32.xlu0 %v351, 24
        %v852 = vpop.permute.xlu0 %851
        %853 = vrot.lane.b32.xlu0 %v352, 24
        %v854 = vpop.permute.xlu0 %853
        %855 = vrot.lane.b32.xlu0 %v353, 24
        %v856 = vpop.permute.xlu0 %855
        %857 = vrot.lane.b32.xlu0 %v354, 24
        %v858 = vpop.permute.xlu0 %857
        %859 = vrot.lane.b32.xlu0 %v355, 24
        %v860 = vpop.permute.xlu0 %859
        %861 = vrot.lane.b32.xlu0 %v356, 24
        %v862 = vpop.permute.xlu0 %861
        %863 = vrot.lane.b32.xlu0 %v715, 24
        %v864 = vpop.permute.xlu0 %863
        %865 = vrot.lane.b32.xlu0 %v834, 24
        %v866 = vpop.permute.xlu0 %865
        %v868 = vunpack.c.l.b16 %v276
        %v869 = vpack.c.b16 %v868, %v868
        %v871 = vshrl.u32 %v834, 16
        %v873 = vshll.u32 %v834, 16
        %v875 = vrot.slane %v873, 1
        %v876 = vor.u32 %v871, %v875
        %v878 = vshll.u32 %v869, 16
        %v880 = vrot.slane %v878, 1
        %v881 = vsel %vm405, %v876, %v880
        %882 = vrot.lane.b32.xlu0 %v441, 28
        %v883 = vpop.permute.xlu0 %882
        %884 = vrot.lane.b32.xlu0 %v453, 28
        %v885 = vpop.permute.xlu0 %884
        %886 = vrot.lane.b32.xlu0 %v465, 28
        %v887 = vpop.permute.xlu0 %886
        %888 = vrot.lane.b32.xlu0 %v477, 28
        %v889 = vpop.permute.xlu0 %888
        %890 = vrot.lane.b32.xlu0 %v489, 28
        %v891 = vpop.permute.xlu0 %890
        %892 = vrot.lane.b32.xlu0 %v501, 28
        %v893 = vpop.permute.xlu0 %892
        %894 = vrot.lane.b32.xlu0 %v513, 28
        %v895 = vpop.permute.xlu0 %894
        %896 = vrot.lane.b32.xlu0 %v525, 28
        %v897 = vpop.permute.xlu0 %896
        %898 = vrot.lane.b32.xlu0 %v537, 28
        %v899 = vpop.permute.xlu0 %898
        %900 = vrot.lane.b32.xlu0 %v549, 28
        %v901 = vpop.permute.xlu0 %900
        %902 = vrot.lane.b32.xlu0 %v561, 28
        %v903 = vpop.permute.xlu0 %902
        %904 = vrot.lane.b32.xlu0 %v573, 28
        %v905 = vpop.permute.xlu0 %904
        %906 = vrot.lane.b32.xlu0 %v585, 28
        %v907 = vpop.permute.xlu0 %906
        %908 = vrot.lane.b32.xlu0 %v597, 28
        %v909 = vpop.permute.xlu0 %908
        %910 = vrot.lane.b32.xlu0 %v762, 28
        %v911 = vpop.permute.xlu0 %910
        %912 = vrot.lane.b32.xlu0 %v881, 28
        %v913 = vpop.permute.xlu0 %912
        %v914 = vrot.slane %v834, 1
        %v915 = vrot.slane %v869, 1
        %v916 = vsel %vm630, %v914, %v915
        %917 = vrot.lane.b32.xlu0 %v639, 32
        %v918 = vpop.permute.xlu0 %917
        %919 = vrot.lane.b32.xlu0 %v642, 32
        %v920 = vpop.permute.xlu0 %919
        %921 = vrot.lane.b32.xlu0 %v645, 32
        %v922 = vpop.permute.xlu0 %921
        %923 = vrot.lane.b32.xlu0 %v648, 32
        %v924 = vpop.permute.xlu0 %923
        %925 = vrot.lane.b32.xlu0 %v651, 32
        %v926 = vpop.permute.xlu0 %925
        %927 = vrot.lane.b32.xlu0 %v654, 32
        %v928 = vpop.permute.xlu0 %927
        %929 = vrot.lane.b32.xlu0 %v657, 32
        %v930 = vpop.permute.xlu0 %929
        %931 = vrot.lane.b32.xlu0 %v660, 32
        %v932 = vpop.permute.xlu0 %931
        %933 = vrot.lane.b32.xlu0 %v663, 32
        %v934 = vpop.permute.xlu0 %933
        %935 = vrot.lane.b32.xlu0 %v666, 32
        %v936 = vpop.permute.xlu0 %935
        %937 = vrot.lane.b32.xlu0 %v669, 32
        %v938 = vpop.permute.xlu0 %937
        %939 = vrot.lane.b32.xlu0 %v672, 32
        %v940 = vpop.permute.xlu0 %939
        %941 = vrot.lane.b32.xlu0 %v675, 32
        %v942 = vpop.permute.xlu0 %941
        %943 = vrot.lane.b32.xlu0 %v678, 32
        %v944 = vpop.permute.xlu0 %943
        %945 = vrot.lane.b32.xlu0 %v797, 32
        %v946 = vpop.permute.xlu0 %945
        %947 = vrot.lane.b32.xlu0 %v916, 32
        %v948 = vpop.permute.xlu0 %947
        %vm949 = vcmask 31744
        %v951 = vsel %vm949, %v341, %v599
        %v953 = vsel %vm949, %v342, %v601
        %v955 = vsel %vm949, %v343, %v603
        %v957 = vsel %vm949, %v344, %v605
        %v959 = vsel %vm949, %v345, %v607
        %v961 = vsel %vm949, %v346, %v609
        %v963 = vsel %vm949, %v347, %v611
        %v965 = vsel %vm949, %v348, %v613
        %v967 = vsel %vm949, %v349, %v615
        %v969 = vsel %vm949, %v350, %v617
        %v971 = vsel %vm949, %v351, %v619
        %v973 = vsel %vm949, %v352, %v621
        %v975 = vsel %vm949, %v353, %v623
        %v977 = vsel %vm949, %v354, %v625
        %v979 = vsel %vm949, %v355, %v627
        %v981 = vsel %vm949, %v356, %v629
        %vm982 = vcmask 64512
        %v984 = vsel %vm982, %v951, %v680
        %v986 = vsel %vm982, %v953, %v682
        %v988 = vsel %vm982, %v955, %v684
        %v990 = vsel %vm982, %v957, %v686
        %v992 = vsel %vm982, %v959, %v688
        %v994 = vsel %vm982, %v961, %v690
        %v996 = vsel %vm982, %v963, %v692
        %v998 = vsel %vm982, %v965, %v694
        %v1000 = vsel %vm982, %v967, %v696
        %v1002 = vsel %vm982, %v969, %v698
        %v1004 = vsel %vm982, %v971, %v700
        %v1006 = vsel %vm982, %v973, %v702
        %v1008 = vsel %vm982, %v975, %v704
        %v1010 = vsel %vm982, %v977, %v706
        %v1012 = vsel %vm982, %v979, %v708
        %v1014 = vsel %vm982, %v981, %v710
        %vm1015 = vcmask 97280
        %v1017 = vsel %vm1015, %v984, %v717
        %v1019 = vsel %vm1015, %v986, %v719
        %v1021 = vsel %vm1015, %v988, %v721
        %v1023 = vsel %vm1015, %v990, %v723
        %v1025 = vsel %vm1015, %v992, %v725
        %v1027 = vsel %vm1015, %v994, %v727
        %v1029 = vsel %vm1015, %v996, %v729
        %v1031 = vsel %vm1015, %v998, %v731
        %v1033 = vsel %vm1015, %v1000, %v733
        %v1035 = vsel %vm1015, %v1002, %v735
        %v1037 = vsel %vm1015, %v1004, %v737
        %v1039 = vsel %vm1015, %v1006, %v739
        %v1041 = vsel %vm1015, %v1008, %v741
        %v1043 = vsel %vm1015, %v1010, %v743
        %v1045 = vsel %vm1015, %v1012, %v745
        %v1047 = vsel %vm1015, %v1014, %v747
        %vm1048 = vcmask 130048
        %v1050 = vsel %vm1048, %v1017, %v764
        %v1052 = vsel %vm1048, %v1019, %v766
        %v1054 = vsel %vm1048, %v1021, %v768
        %v1056 = vsel %vm1048, %v1023, %v770
        %v1058 = vsel %vm1048, %v1025, %v772
        %v1060 = vsel %vm1048, %v1027, %v774
        %v1062 = vsel %vm1048, %v1029, %v776
        %v1064 = vsel %vm1048, %v1031, %v778
        %v1066 = vsel %vm1048, %v1033, %v780
        %v1068 = vsel %vm1048, %v1035, %v782
        %v1070 = vsel %vm1048, %v1037, %v784
        %v1072 = vsel %vm1048, %v1039, %v786
        %v1074 = vsel %vm1048, %v1041, %v788
        %v1076 = vsel %vm1048, %v1043, %v790
        %v1078 = vsel %vm1048, %v1045, %v792
        %v1080 = vsel %vm1048, %v1047, %v794
        %vm1081 = vcmask 162816
        %v1083 = vsel %vm1081, %v1050, %v799
        %v1085 = vsel %vm1081, %v1052, %v801
        %v1087 = vsel %vm1081, %v1054, %v803
        %v1089 = vsel %vm1081, %v1056, %v805
        %v1091 = vsel %vm1081, %v1058, %v807
        %v1093 = vsel %vm1081, %v1060, %v809
        %v1095 = vsel %vm1081, %v1062, %v811
        %v1097 = vsel %vm1081, %v1064, %v813
        %v1099 = vsel %vm1081, %v1066, %v815
        %v1101 = vsel %vm1081, %v1068, %v817
        %v1103 = vsel %vm1081, %v1070, %v819
        %v1105 = vsel %vm1081, %v1072, %v821
        %v1107 = vsel %vm1081, %v1074, %v823
        %v1109 = vsel %vm1081, %v1076, %v825
        %v1111 = vsel %vm1081, %v1078, %v827
        %v1113 = vsel %vm1081, %v1080, %v829
        %vm1114 = vcmask 195584
        %v1116 = vsel %vm1114, %v1083, %v836
        %v1118 = vsel %vm1114, %v1085, %v838
        %v1120 = vsel %vm1114, %v1087, %v840
        %v1122 = vsel %vm1114, %v1089, %v842
        %v1124 = vsel %vm1114, %v1091, %v844
        %v1126 = vsel %vm1114, %v1093, %v846
        %v1128 = vsel %vm1114, %v1095, %v848
        %v1130 = vsel %vm1114, %v1097, %v850
        %v1132 = vsel %vm1114, %v1099, %v852
        %v1134 = vsel %vm1114, %v1101, %v854
        %v1136 = vsel %vm1114, %v1103, %v856
        %v1138 = vsel %vm1114, %v1105, %v858
        %v1140 = vsel %vm1114, %v1107, %v860
        %v1142 = vsel %vm1114, %v1109, %v862
        %v1144 = vsel %vm1114, %v1111, %v864
        %v1146 = vsel %vm1114, %v1113, %v866
        %vm1147 = vcmask 228352
        %v1149 = vsel %vm1147, %v1116, %v883
        %v1151 = vsel %vm1147, %v1118, %v885
        %v1153 = vsel %vm1147, %v1120, %v887
        %v1155 = vsel %vm1147, %v1122, %v889
        %v1157 = vsel %vm1147, %v1124, %v891
        %v1159 = vsel %vm1147, %v1126, %v893
        %v1161 = vsel %vm1147, %v1128, %v895
        %v1163 = vsel %vm1147, %v1130, %v897
        %v1165 = vsel %vm1147, %v1132, %v899
        %v1167 = vsel %vm1147, %v1134, %v901
        %v1169 = vsel %vm1147, %v1136, %v903
        %v1171 = vsel %vm1147, %v1138, %v905
        %v1173 = vsel %vm1147, %v1140, %v907
        %v1175 = vsel %vm1147, %v1142, %v909
        %v1177 = vsel %vm1147, %v1144, %v911
        %v1179 = vsel %vm1147, %v1146, %v913
        %vm1180 = vcmask 261120
        %v1182 = vsel %vm1180, %v1149, %v918
        %v1184 = vsel %vm1180, %v1151, %v920
        %v1186 = vsel %vm1180, %v1153, %v922
        %v1188 = vsel %vm1180, %v1155, %v924
        %v1190 = vsel %vm1180, %v1157, %v926
        %v1192 = vsel %vm1180, %v1159, %v928
        %v1194 = vsel %vm1180, %v1161, %v930
        %v1196 = vsel %vm1180, %v1163, %v932
        %v1198 = vsel %vm1180, %v1165, %v934
        %v1200 = vsel %vm1180, %v1167, %v936
        %v1202 = vsel %vm1180, %v1169, %v938
        %v1204 = vsel %vm1180, %v1171, %v940
        %v1206 = vsel %vm1180, %v1173, %v942
        %v1208 = vsel %vm1180, %v1175, %v944
        %v1210 = vsel %vm1180, %v1177, %v946
        %v1212 = vsel %vm1180, %v1179, %v948
        %v1213 = vld [vmem:[%s1] sm:$0xf]
        %v1214 = vld [vmem:[%s1 + $0x4] sm:$0xf]
        %v1215 = vld [vmem:[%s1 + $0x8] sm:$0xf]
        %v1216 = vld [vmem:[%s1 + $0xc] sm:$0xf]
        %v1217 = vld [vmem:[%s1 + $0x10] sm:$0x3]
        %v1218 = vld [vmem:[%s2] sm:$0x1]
        %v1220 = vlaneseq
        %v1221 = vshrl.u32 %v1220, 7
        %v1222 = vsub.s32 0, %v1221
        %v1223 = vrot.slane %v1218, %v1222
        %v1230 = vunpack.c.l.b16 %v1213
        %v1231 = vunpack.c.l.b16 %v1214
        %v1232 = vunpack.c.l.b16 %v1215
        %v1233 = vunpack.c.l.b16 %v1216
        %v1234 = vunpack.c.l.b16 %v1217
        %v1235 = vpack.c.b16 %v1231, %v1230
        %v1236 = vpack.c.b16 %v1233, %v1232
        %v1237 = vpack.c.b16 %v1234, %v1234
        %vm1240 = vcmask 293888
        %v1241 = vsel %vm1240, %v1182, 0
        %v1243 = vsel %vm1240, %v1184, 0
        %v1245 = vsel %vm1240, %v1186, 0
        %v1247 = vsel %vm1240, %v1188, 0
        %v1249 = vsel %vm1240, %v1190, 0
        %v1251 = vsel %vm1240, %v1192, 0
        %v1253 = vsel %vm1240, %v1194, 0
        %v1255 = vsel %vm1240, %v1196, 0
        %v1257 = vsel %vm1240, %v1198, 0
        %v1259 = vsel %vm1240, %v1200, 0
        %v1261 = vsel %vm1240, %v1202, 0
        %v1263 = vsel %vm1240, %v1204, 0
        %v1265 = vsel %vm1240, %v1206, 0
        %v1267 = vsel %vm1240, %v1208, 0
        %v1269 = vsel %vm1240, %v1210, 0
        %v1271 = vsel %vm1240, %v1212, 0
        %vm1273 = vcmask 1041408
        %v1275 = vsel %vm1273, %v1237, 0
        %1277 = vmatprep.subr.bf16.mxu0 0
        %1278 = vmatpush1.bf16.msra.mxu0 %v1235
        %1279 = vmatprep.subr.bf16.mxu0 0
        %1280 = vmatpush1.bf16.msra.mxu0 %v1236
        %1281 = vmatprep.subr.bf16.mxu0 0
        %1282 = vmatpush1.bf16.msra.mxu0 %v1275
        %1283 = vmatprep.subr.bf16.mxu0 0
        %1284 = vmatpush1.bf16.msra.mxu0 0
        %1285 = vmatprep.subr.bf16.mxu0 0
        %1286 = vmatpush1.bf16.msra.mxu0 0
        %1287 = vmatprep.subr.bf16.mxu0 0
        %1288 = vmatpush1.bf16.msra.mxu0 0
        %1289 = vmatprep.subr.bf16.mxu0 0
        %1290 = vmatpush1.bf16.msra.mxu0 0
        %1291 = vmatprep.subr.bf16.mxu0 0
        %1292 = vmatpush1.bf16.msra.mxu0 0
        %1293 = vmatprep.subr.bf16.mxu0 0
        %1294 = vmatpush1.bf16.msra.mxu0 0
        %1295 = vmatprep.subr.bf16.mxu0 0
        %1296 = vmatpush1.bf16.msra.mxu0 0
        %1297 = vmatprep.subr.bf16.mxu0 0
        %1298 = vmatpush1.bf16.msra.mxu0 0
        %1299 = vmatprep.subr.bf16.mxu0 0
        %1300 = vmatpush1.bf16.msra.mxu0 0
        %1301 = vmatprep.subr.bf16.mxu0 0
        %1302 = vmatpush1.bf16.msra.mxu0 0
        %1303 = vmatprep.subr.bf16.mxu0 0
        %1304 = vmatpush1.bf16.msra.mxu0 0
        %1305 = vmatprep.subr.bf16.mxu0 0
        %1306 = vmatpush1.bf16.msra.mxu0 0
        %1307 = vmatprep.subr.bf16.mxu0 0
        %1308 = vmatpush1.bf16.msra.mxu0 0
        %1309 = vmatprep.mubr.bf16.mxu0 0
        %1310 = vmatmul.mubr.bf16.gmra.mrb[0].mxu0 %v1241
        %v1311 = vpop.f32.mrb[0].mxu0
        %v1312 = vadd.f32 %v1223, %v1311
        %v1313 = vpop.f32.mrb[0].mxu0
        %v1314 = vpop.f32.mrb[0].mxu0
        %v1315 = vadd.f32 %v1223, %v1314
        %v1316 = vpop.f32.mrb[0].mxu0
        %1317 = vmatprep.mubr.bf16.mxu0 0
        %1318 = vmatmul.mubr.bf16.gmra.mrb[0].mxu0 %v1243
        %v1319 = vpop.f32.mrb[0].mxu0
        %v1320 = vadd.f32 %v1223, %v1319
        %v1321 = vpop.f32.mrb[0].mxu0
        %v1322 = vpop.f32.mrb[0].mxu0
        %v1323 = vadd.f32 %v1223, %v1322
        %v1324 = vpop.f32.mrb[0].mxu0
        %1325 = vmatprep.mubr.bf16.mxu0 0
        %1326 = vmatmul.mubr.bf16.gmra.mrb[0].mxu0 %v1245
        %v1327 = vpop.f32.mrb[0].mxu0
        %v1328 = vadd.f32 %v1223, %v1327
        %v1329 = vpop.f32.mrb[0].mxu0
        %v1330 = vpop.f32.mrb[0].mxu0
        %v1331 = vadd.f32 %v1223, %v1330
        %v1332 = vpop.f32.mrb[0].mxu0
        %1333 = vmatprep.mubr.bf16.mxu0 0
        %1334 = vmatmul.mubr.bf16.gmra.mrb[0].mxu0 %v1247
        %v1335 = vpop.f32.mrb[0].mxu0
        %v1336 = vadd.f32 %v1223, %v1335
        %v1337 = vpop.f32.mrb[0].mxu0
        %v1338 = vpop.f32.mrb[0].mxu0
        %v1339 = vadd.f32 %v1223, %v1338
        %v1340 = vpop.f32.mrb[0].mxu0
        %1341 = vmatprep.mubr.bf16.mxu0 0
        %1342 = vmatmul.mubr.bf16.gmra.mrb[0].mxu0 %v1249
        %v1343 = vpop.f32.mrb[0].mxu0
        %v1344 = vadd.f32 %v1223, %v1343
        %v1345 = vpop.f32.mrb[0].mxu0
        %v1346 = vpop.f32.mrb[0].mxu0
        %v1347 = vadd.f32 %v1223, %v1346
        %v1348 = vpop.f32.mrb[0].mxu0
        %1349 = vmatprep.mubr.bf16.mxu0 0
        %1350 = vmatmul.mubr.bf16.gmra.mrb[0].mxu0 %v1251
        %v1351 = vpop.f32.mrb[0].mxu0
        %v1352 = vadd.f32 %v1223, %v1351
        %v1353 = vpop.f32.mrb[0].mxu0
        %v1354 = vpop.f32.mrb[0].mxu0
        %v1355 = vadd.f32 %v1223, %v1354
        %v1356 = vpop.f32.mrb[0].mxu0
        %1357 = vmatprep.mubr.bf16.mxu0 0
        %1358 = vmatmul.mubr.bf16.gmra.mrb[0].mxu0 %v1253
        %v1359 = vpop.f32.mrb[0].mxu0
        %v1360 = vadd.f32 %v1223, %v1359
        %v1361 = vpop.f32.mrb[0].mxu0
        %v1362 = vpop.f32.mrb[0].mxu0
        %v1363 = vadd.f32 %v1223, %v1362
        %v1364 = vpop.f32.mrb[0].mxu0
        %1365 = vmatprep.mubr.bf16.mxu0 0
        %1366 = vmatmul.mubr.bf16.gmra.mrb[0].mxu0 %v1255
        %v1367 = vpop.f32.mrb[0].mxu0
        %v1368 = vadd.f32 %v1223, %v1367
        %v1369 = vpop.f32.mrb[0].mxu0
        %v1370 = vpop.f32.mrb[0].mxu0
        %v1371 = vadd.f32 %v1223, %v1370
        %v1372 = vpop.f32.mrb[0].mxu0
        %1373 = vmatprep.mubr.bf16.mxu0 0
        %1374 = vmatmul.mubr.bf16.gmra.mrb[0].mxu0 %v1257
        %v1375 = vpop.f32.mrb[0].mxu0
        %v1376 = vadd.f32 %v1223, %v1375
        %v1377 = vpop.f32.mrb[0].mxu0
        %v1378 = vpop.f32.mrb[0].mxu0
        %v1379 = vadd.f32 %v1223, %v1378
        %v1380 = vpop.f32.mrb[0].mxu0
        %1381 = vmatprep.mubr.bf16.mxu0 0
        %1382 = vmatmul.mubr.bf16.gmra.mrb[0].mxu0 %v1259
        %v1383 = vpop.f32.mrb[0].mxu0
        %v1384 = vadd.f32 %v1223, %v1383
        %v1385 = vpop.f32.mrb[0].mxu0
        %v1386 = vpop.f32.mrb[0].mxu0
        %v1387 = vadd.f32 %v1223, %v1386
        %v1388 = vpop.f32.mrb[0].mxu0
        %1389 = vmatprep.mubr.bf16.mxu0 0
        %1390 = vmatmul.mubr.bf16.gmra.mrb[0].mxu0 %v1261
        %v1391 = vpop.f32.mrb[0].mxu0
        %v1392 = vadd.f32 %v1223, %v1391
        %v1393 = vpop.f32.mrb[0].mxu0
        %v1394 = vpop.f32.mrb[0].mxu0
        %v1395 = vadd.f32 %v1223, %v1394
        %v1396 = vpop.f32.mrb[0].mxu0
        %1397 = vmatprep.mubr.bf16.mxu0 0
        %1398 = vmatmul.mubr.bf16.gmra.mrb[0].mxu0 %v1263
        %v1399 = vpop.f32.mrb[0].mxu0
        %v1400 = vadd.f32 %v1223, %v1399
        %v1401 = vpop.f32.mrb[0].mxu0
        %v1402 = vpop.f32.mrb[0].mxu0
        %v1403 = vadd.f32 %v1223, %v1402
        %v1404 = vpop.f32.mrb[0].mxu0
        %1405 = vmatprep.mubr.bf16.mxu0 0
        %1406 = vmatmul.mubr.bf16.gmra.mrb[0].mxu0 %v1265
        %v1407 = vpop.f32.mrb[0].mxu0
        %v1408 = vadd.f32 %v1223, %v1407
        %v1409 = vpop.f32.mrb[0].mxu0
        %v1410 = vpop.f32.mrb[0].mxu0
        %v1411 = vadd.f32 %v1223, %v1410
        %v1412 = vpop.f32.mrb[0].mxu0
        %1413 = vmatprep.mubr.bf16.mxu0 0
        %1414 = vmatmul.mubr.bf16.gmra.mrb[0].mxu0 %v1267
        %v1415 = vpop.f32.mrb[0].mxu0
        %v1416 = vadd.f32 %v1223, %v1415
        %v1417 = vpop.f32.mrb[0].mxu0
        %v1418 = vpop.f32.mrb[0].mxu0
        %v1419 = vadd.f32 %v1223, %v1418
        %v1420 = vpop.f32.mrb[0].mxu0
        %1421 = vmatprep.mubr.bf16.mxu0 0
        %1422 = vmatmul.mubr.bf16.gmra.mrb[0].mxu0 %v1269
        %v1423 = vpop.f32.mrb[0].mxu0
        %v1424 = vadd.f32 %v1223, %v1423
        %v1425 = vpop.f32.mrb[0].mxu0
        %v1426 = vpop.f32.mrb[0].mxu0
        %v1427 = vadd.f32 %v1223, %v1426
        %v1428 = vpop.f32.mrb[0].mxu0
        %1429 = vmatprep.mubr.bf16.mxu0 0
        %1430 = vmatmul.mubr.bf16.gmra.mrb[0].mxu0 %v1271
        %v1431 = vpop.f32.mrb[0].mxu0
        %v1432 = vadd.f32 %v1223, %v1431
        %v1433 = vpop.f32.mrb[0].mxu0
        %v1434 = vpop.f32.mrb[0].mxu0
        %v1435 = vadd.f32 %v1223, %v1434
        %v1436 = vpop.f32.mrb[0].mxu0
        %1437 = vdwg.mxu0
        %v1438 = vmax.f32 %v1312, 0.0
        %v1439 = vmax.f32 %v1315, 0.0
        %v1440 = vmax.f32 %v1320, 0.0
        %v1441 = vmax.f32 %v1323, 0.0
        %v1442 = vmax.f32 %v1328, 0.0
        %v1443 = vmax.f32 %v1331, 0.0
        %v1444 = vmax.f32 %v1336, 0.0
        %v1445 = vmax.f32 %v1339, 0.0
        %v1446 = vmax.f32 %v1344, 0.0
        %v1447 = vmax.f32 %v1347, 0.0
        %v1448 = vmax.f32 %v1352, 0.0
        %v1449 = vmax.f32 %v1355, 0.0
        %v1450 = vmax.f32 %v1360, 0.0
        %v1451 = vmax.f32 %v1363, 0.0
        %v1452 = vmax.f32 %v1368, 0.0
        %v1453 = vmax.f32 %v1371, 0.0
        %v1454 = vmax.f32 %v1376, 0.0
        %v1455 = vmax.f32 %v1379, 0.0
        %v1456 = vmax.f32 %v1384, 0.0
        %v1457 = vmax.f32 %v1387, 0.0
        %v1458 = vmax.f32 %v1392, 0.0
        %v1459 = vmax.f32 %v1395, 0.0
        %v1460 = vmax.f32 %v1400, 0.0
        %v1461 = vmax.f32 %v1403, 0.0
        %v1462 = vmax.f32 %v1408, 0.0
        %v1463 = vmax.f32 %v1411, 0.0
        %v1464 = vmax.f32 %v1416, 0.0
        %v1465 = vmax.f32 %v1419, 0.0
        %v1466 = vmax.f32 %v1424, 0.0
        %v1467 = vmax.f32 %v1427, 0.0
        %v1468 = vmax.f32 %v1432, 0.0
        %v1469 = vmax.f32 %v1435, 0.0
        %v1470 = vsel %vm1048, %v1438, 0.0
        %v1471 = vsel %vm1048, %v1439, 0.0
        %v1472 = vadd.f32 %v1470, %v1471
        %v1473 = vsel %vm1048, %v1440, 0.0
        %v1474 = vadd.f32 %v1472, %v1473
        %v1475 = vsel %vm1048, %v1441, 0.0
        %v1476 = vadd.f32 %v1474, %v1475
        %v1477 = vsel %vm1048, %v1442, 0.0
        %v1478 = vadd.f32 %v1476, %v1477
        %v1479 = vsel %vm1048, %v1443, 0.0
        %v1480 = vadd.f32 %v1478, %v1479
        %v1481 = vsel %vm1048, %v1444, 0.0
        %v1482 = vadd.f32 %v1480, %v1481
        %v1483 = vsel %vm1048, %v1445, 0.0
        %v1484 = vadd.f32 %v1482, %v1483
        %v1485 = vsel %vm1048, %v1446, 0.0
        %v1486 = vadd.f32 %v1484, %v1485
        %v1487 = vsel %vm1048, %v1447, 0.0
        %v1488 = vadd.f32 %v1486, %v1487
        %v1489 = vsel %vm1048, %v1448, 0.0
        %v1490 = vadd.f32 %v1488, %v1489
        %v1491 = vsel %vm1048, %v1449, 0.0
        %v1492 = vadd.f32 %v1490, %v1491
        %v1493 = vsel %vm1048, %v1450, 0.0
        %v1494 = vadd.f32 %v1492, %v1493
        %v1495 = vsel %vm1048, %v1451, 0.0
        %v1496 = vadd.f32 %v1494, %v1495
        %v1497 = vsel %vm1048, %v1452, 0.0
        %v1498 = vadd.f32 %v1496, %v1497
        %v1499 = vsel %vm1048, %v1453, 0.0
        %v1500 = vadd.f32 %v1498, %v1499
        %v1501 = vsel %vm1048, %v1454, 0.0
        %v1502 = vadd.f32 %v1500, %v1501
        %v1503 = vsel %vm1048, %v1455, 0.0
        %v1504 = vadd.f32 %v1502, %v1503
        %v1505 = vsel %vm1048, %v1456, 0.0
        %v1506 = vadd.f32 %v1504, %v1505
        %v1507 = vsel %vm1048, %v1457, 0.0
        %v1508 = vadd.f32 %v1506, %v1507
        %v1509 = vsel %vm1048, %v1458, 0.0
        %v1510 = vadd.f32 %v1508, %v1509
        %v1511 = vsel %vm1048, %v1459, 0.0
        %v1512 = vadd.f32 %v1510, %v1511
        %v1513 = vsel %vm1048, %v1460, 0.0
        %v1514 = vadd.f32 %v1512, %v1513
        %v1515 = vsel %vm1048, %v1461, 0.0
        %v1516 = vadd.f32 %v1514, %v1515
        %v1517 = vsel %vm1048, %v1462, 0.0
        %v1518 = vadd.f32 %v1516, %v1517
        %v1519 = vsel %vm1048, %v1463, 0.0
        %v1520 = vadd.f32 %v1518, %v1519
        %v1521 = vsel %vm1048, %v1464, 0.0
        %v1522 = vadd.f32 %v1520, %v1521
        %v1523 = vsel %vm1048, %v1465, 0.0
        %v1524 = vadd.f32 %v1522, %v1523
        %v1525 = vsel %vm1048, %v1466, 0.0
        %v1526 = vadd.f32 %v1524, %v1525
        %v1527 = vsel %vm1048, %v1467, 0.0
        %v1528 = vadd.f32 %v1526, %v1527
        %v1529 = vsel %vm1048, %v1468, 0.0
        %v1530 = vadd.f32 %v1528, %v1529
        %v1531 = vsel %vm1048, %v1469, 0.0
        %v1532 = vadd.f32 %v1530, %v1531
        %v1533 = vrot.slane %v1532, 4
        %v1534 = vadd.f32 %v1532, %v1533
        %v1535 = vrot.slane %v1534, 2
        %v1536 = vadd.f32 %v1534, %v1535
        %v1537 = vrot.slane %v1536, 1
        %v1538 = vadd.f32 %v1536, %v1537
        %v1539 = vrcp.pop 256.0
        %v1540 = vmul.f32 %v1538, %v1539
        %v1541 = vld [vmem:[%s3] sm:$0xff]
        %v1542 = vld [vmem:[%s3 + $0x8] sm:$0xff]
        %v1543 = vld [vmem:[%s4] sm:$0x1]
        %v1545 = vsel %vm1048, %v1540, 0
        %1547 = vmatprep.subr.mxu0 0.0
        %1548 = vmatpush1.msra.mxu0 %v1541
        %1549 = vmatprep.subr.mxu0 0.0
        %1550 = vmatpush1.msra.mxu0 %v1542
        %1551 = vmatprep.subr.mxu0 0.0
        %1552 = vmatpush1.msra.mxu0 0.0
        %1553 = vmatprep.subr.mxu0 0.0
        %1554 = vmatpush1.msra.mxu0 0.0
        %1555 = vmatprep.subr.mxu0 0.0
        %1556 = vmatpush1.msra.mxu0 0.0
        %1557 = vmatprep.subr.mxu0 0.0
        %1558 = vmatpush1.msra.mxu0 0.0
        %1559 = vmatprep.subr.mxu0 0.0
        %1560 = vmatpush1.msra.mxu0 0.0
        %1561 = vmatprep.subr.mxu0 0.0
        %1562 = vmatpush1.msra.mxu0 0.0
        %1563 = vmatprep.subr.mxu0 0.0
        %1564 = vmatpush1.msra.mxu0 0.0
        %1565 = vmatprep.subr.mxu0 0.0
        %1566 = vmatpush1.msra.mxu0 0.0
        %1567 = vmatprep.subr.mxu0 0.0
        %1568 = vmatpush1.msra.mxu0 0.0
        %1569 = vmatprep.subr.mxu0 0.0
        %1570 = vmatpush1.msra.mxu0 0.0
        %1571 = vmatprep.subr.mxu0 0.0
        %1572 = vmatpush1.msra.mxu0 0.0
        %1573 = vmatprep.subr.mxu0 0.0
        %1574 = vmatpush1.msra.mxu0 0.0
        %1575 = vmatprep.subr.mxu0 0.0
        %1576 = vmatpush1.msra.mxu0 0.0
        %1577 = vmatprep.subr.mxu0 0.0
        %1578 = vmatpush1.msra.mxu0 0.0
        %1579 = vmatprep.subr.mxu0 0.0
        %1580 = vmatpush1.msra.mxu0 0.0
        %1581 = vmatprep.subr.mxu0 0.0
        %1582 = vmatpush1.msra.mxu0 0.0
        %1583 = vmatprep.subr.mxu0 0.0
        %1584 = vmatpush1.msra.mxu0 0.0
        %1585 = vmatprep.subr.mxu0 0.0
        %1586 = vmatpush1.msra.mxu0 0.0
        %1587 = vmatprep.subr.mxu0 0.0
        %1588 = vmatpush1.msra.mxu0 0.0
        %1589 = vmatprep.subr.mxu0 0.0
        %1590 = vmatpush1.msra.mxu0 0.0
        %1591 = vmatprep.subr.mxu0 0.0
        %1592 = vmatpush1.msra.mxu0 0.0
        %1593 = vmatprep.subr.mxu0 0.0
        %1594 = vmatpush1.msra.mxu0 0.0
        %1595 = vmatprep.subr.mxu0 0.0
        %1596 = vmatpush1.msra.mxu0 0.0
        %1597 = vmatprep.subr.mxu0 0.0
        %1598 = vmatpush1.msra.mxu0 0.0
        %1599 = vmatprep.subr.mxu0 0.0
        %1600 = vmatpush1.msra.mxu0 0.0
        %1601 = vmatprep.subr.mxu0 0.0
        %1602 = vmatpush1.msra.mxu0 0.0
        %1603 = vmatprep.subr.mxu0 0.0
        %1604 = vmatpush1.msra.mxu0 0.0
        %1605 = vmatprep.subr.mxu0 0.0
        %1606 = vmatpush1.msra.mxu0 0.0
        %1607 = vmatprep.subr.mxu0 0.0
        %1608 = vmatpush1.msra.mxu0 0.0
        %1609 = vmatprep.subr.mxu0 0.0
        %1610 = vmatpush1.msra.mxu0 0.0
        %1611 = vmatprep.mubr.f32.mxu0 0.0
        %1612 = vmatmul.mubr.f32.gmra.mrb[0].mxu0 %v1545
        %v1613 = vpop.f32.mrb[0].mxu0
        %v1614 = vadd.f32 %v1543, %v1613
        %v1615 = vpop.f32.mrb[0].mxu0
        %1616 = vdwg.mxu0
        %vm1617 = vcmask 253952
        %1618 = vst.msk [vmem:[%s216] sm:$0x1] %vm1617, %v1614
        %s1619 = sand.u32 %s137, 1
        %s1620 = scalar_lea.sflag [#allocation3], %s1619
        %s1621 = sand.u32 %s137, 1
        %s1622 = scalar_lea.vmem [#allocation2], %s1621
        // Predicated region
        $region41: #{tpu_custom_call.1} parent=39 // pred_check
          %p1623 = pneg %p147
        $region42: #{tpu_custom_call.1} parent=39 // pred_check_branch
          %1625 = sbr.rel (%p1623) target = $region44
        $region43: #{tpu_custom_call.1} parent=39 // pred_region
          %s1627 = ssub.s32 16, 16
          %1628 = vsyncadd %s1620, %s1627
          %s1629 = smul.addr %s19, 16
          %s1630 = scalar_lea.hbm %s5, %s1629
          %s1632 = sshll.u32 %s1622, 4
          %s1633 = int_to_ptr.vmem [resolvable:$true] %s1632
          %1635 = dma.vmem_to_hbm [thread:$0]  %s1633, 16, %s1630, %s1620
        $region44: #{tpu_custom_call.1} parent=39 // pred_fallthru
          _
      $region40: #{tpu_custom_call.1} parent=5 // pred_fallthru
        _
      %p1636 = scmp.le.s32.totalorder 2, %s14
      // Predicated region
      $region45: #{tpu_custom_call.1} parent=5 // pred_check
        %p1637 = pneg %p1636
      $region46: #{tpu_custom_call.1} parent=5 // pred_check_branch
        %1639 = sbr.rel (%p1637) target = $region48
      $region47: #{tpu_custom_call.1} parent=5 // pred_region
        %s1640 = ssub.s32 %s14, 2
        // Predicated region
        $region49: #{tpu_custom_call.1} parent=47 // pred_check
          %p1641 = pneg %p153
        $region50: #{tpu_custom_call.1} parent=47 // pred_check_branch
          %1643 = sbr.rel (%p1641) target = $region52
        $region51: #{tpu_custom_call.1} parent=47 // pred_region
          %s1644 = sand.u32 %s138, 1
          %s1645 = scalar_lea.sflag [#allocation3], %s1644
          %s1646 = sand.u32 %s138, 1
          %s1647 = scalar_lea.vmem [#allocation2], %s1646
          %1648 = dma.done %s1645, 16
        $region52: #{tpu_custom_call.1} parent=47 // pred_fallthru
          _
      $region48: #{tpu_custom_call.1} parent=5 // pred_fallthru
        _
    $region6: #{tpu_custom_call.1} parent=1 // loop_footer
      %s18 = sadd.s32 1, %s14
    $region7: #{tpu_custom_call.1} parent=1 // loop_footer_branch
      %13 = sbr.rel target = $region3
    $region8: #{tpu_custom_call.1} parent=1 // loop_exit
      _
    %1649 = vsyncpa [#allocation3], 1
    %s1650 = scalar_lea.sflag [#allocation3], 1
    %1651 = vsyncpa %s1650, 1

</llo_original>
